<compile_context>
chip_gen: v7x
topology: tpu7x:2x2x1
jax: 0.10.0
libtpu: 0.0.40
codegen_flags: <defaults>
</compile_context>

<pallas_src>
import functools

import jax
import jax.numpy as jnp
from jax.experimental import pallas as pl
from jax.experimental.pallas import tpu as pltpu


def _gru_kernel(x_ref, wih_ref, whh_ref, bx_ref, bhn_ref, h0_ref,
                hT_ref, gx_ref, *, seq_len, batch):
    """Whole GRU sequence in one invocation.

    x_ref  : (T*B, D)    time-major, flattened input
    wih_ref: (D, 3H)     W_ih^T, gate columns in PyTorch order [r | z | n]
    whh_ref: (H, 3H)     W_hh^T, same gate column order
    bx_ref : (1, 3H)     [b_ir+b_hr | b_iz+b_hz | b_in]
    bhn_ref: (1, H)      b_hn (must stay inside the r * (...) term)
    h0_ref : (B, H)
    hT_ref : (B, H)      output (== out_seq[:, -1, :] == ht[0])
    gx_ref : (T*B, 3H)   VMEM scratch: hoisted input projections, all timesteps
    """
    T, B = seq_len, batch
    H = h0_ref.shape[1]

    # ---- Prologue: one wide matmul for every timestep's input projection ----
    gx_ref[...] = (jnp.dot(x_ref[...], wih_ref[...],
                           preferred_element_type=jnp.float32)
                   + bx_ref[...])

    # Hoisted out of the unrolled loop: weight load + bias broadcast.
    whh = whh_ref[...]                                   # (H, 3H)
    bhn = jnp.broadcast_to(bhn_ref[...], (B, H))         # (B, H)

    # ---- Serial recurrence: one hidden matmul + gate math per step ----
    def step(t, h):
        row = pl.multiple_of(t * B, B)                   # sublane-aligned start
        gx = gx_ref[pl.ds(row, B), :]                    # (B, 3H) cached projection
        gh = jnp.dot(h, whh, preferred_element_type=jnp.float32)   # (B, 3H)
        # r and z share one sigmoid over a lane-dense 2H (=128) slab.
        rz = jax.nn.sigmoid(gx[:, :2 * H] + gh[:, :2 * H])
        r = rz[:, :H]
        z = rz[:, H:]
        n = jnp.tanh(gx[:, 2 * H:] + r * (gh[:, 2 * H:] + bhn))
        return (1.0 - z) * n + z * h

    h_final = jax.lax.fori_loop(0, T, step, h0_ref[...], unroll=True)
    hT_ref[...] = h_final                                # single store at the end


def gru_forward(x, his, w_ih, w_hh, b_ih, b_hh):
    """x: (B, T, D) batch_first; his: (1, B, H). Returns (out_seq[:, -1, :], ht)."""
    B, T, D = x.shape
    H = w_hh.shape[1]
    G3 = 3 * H
    assert w_ih.shape == (G3, D) and w_hh.shape == (G3, H)

    # Pre-transposed, gate-concatenated weights: columns in order [r | z | n].
    wih_all = jnp.transpose(w_ih, (1, 0)).astype(jnp.float32)        # (D, 3H)
    whh_all = jnp.transpose(w_hh, (1, 0)).astype(jnp.float32)        # (H, 3H)

    # Biases: fold b_ih + b_hh for r and z into the hoisted projection; keep b_hn
    # separate (it must be multiplied by r together with the hidden projection).
    bi = b_ih.astype(jnp.float32)
    bh = b_hh.astype(jnp.float32)
    bx_all = jnp.concatenate([bi[:2 * H] + bh[:2 * H], bi[2 * H:]])[None, :]  # (1, 3H)
    bhn = bh[2 * H:][None, :]                                                 # (1, H)

    # Time-major, flattened input (tiny): makes the hoisted projection a single
    # matmul and per-step scratch reads plain sublane-aligned slices.
    x_tm = jnp.transpose(x, (1, 0, 2)).reshape(T * B, D).astype(jnp.float32)
    h0 = his[0].astype(jnp.float32)                                           # (B, H)

    kernel = functools.partial(_gru_kernel, seq_len=T, batch=B)

    hT = pl.pallas_call(
        kernel,
        out_shape=jax.ShapeDtypeStruct((B, H), jnp.float32),
        grid=(1,),                                       # single invocation
        in_specs=[
            pl.BlockSpec((T * B, D), lambda i: (0, 0)),  # x, time-major flattened
            pl.BlockSpec((D, G3), lambda i: (0, 0)),     # W_ih^T [r|z|n]
            pl.BlockSpec((H, G3), lambda i: (0, 0)),     # W_hh^T [r|z|n]
            pl.BlockSpec((1, G3), lambda i: (0, 0)),     # pre-summed input biases
            pl.BlockSpec((1, H), lambda i: (0, 0)),      # b_hn
            pl.BlockSpec((B, H), lambda i: (0, 0)),      # h0
        ],
        out_specs=pl.BlockSpec((B, H), lambda i: (0, 0)),
        scratch_shapes=[pltpu.VMEM((T * B, G3), jnp.float32)],   # hoisted x-proj
        compiler_params=pltpu.CompilerParams(
            dimension_semantics=("arbitrary",)),
    )(x_tm, wih_all, whh_all, bx_all, bhn, h0)

    out = hT                        # == out_seq[:, -1, :] for a 1-layer GRU
    ht = hT[None, :, :]             # (num_layers=1, B, H)
    return out, ht


def gru_reference(x, his, w_ih, w_hh, b_ih, b_hh):
    """Pure-JAX reference matching torch.nn.GRU semantics (num_layers=1)."""
    H = w_hh.shape[1]

    def step(h, x_t):
        gx = x_t @ w_ih.T + b_ih
        gh = h @ w_hh.T + b_hh
        r = jax.nn.sigmoid(gx[:, :H] + gh[:, :H])
        z = jax.nn.sigmoid(gx[:, H:2 * H] + gh[:, H:2 * H])
        n = jnp.tanh(gx[:, 2 * H:] + r * gh[:, 2 * H:])
        h_new = (1.0 - z) * n + z * h
        return h_new, h_new

    h_final, outs = jax.lax.scan(step, his[0], jnp.transpose(x, (1, 0, 2)))
    return outs[-1], h_final[None]


if __name__ == "__main__":
    # Small shapes consistent with the module (hidden_size default = 64):
    # input_size=16, hidden_size=64, num_layers=1, batch=8, seq_len=8.
    B, T, D, H = 8, 8, 16, 64

    key = jax.random.PRNGKey(0)
    k_x, k_h, k_wih, k_whh, k_bih, k_bhh = jax.random.split(key, 6)

    # Deterministic parameter init mimicking PyTorch GRU: U(-1/sqrt(H), 1/sqrt(H)).
    bound = 1.0 / jnp.sqrt(jnp.float32(H))
    w_ih = jax.random.uniform(k_wih, (3 * H, D), jnp.float32, -bound, bound)
    w_hh = jax.random.uniform(k_whh, (3 * H, H), jnp.float32, -bound, bound)
    b_ih = jax.random.uniform(k_bih, (3 * H,), jnp.float32, -bound, bound)
    b_hh = jax.random.uniform(k_bhh, (3 * H,), jnp.float32, -bound, bound)

    x = jax.random.normal(k_x, (B, T, D), jnp.float32)
    his = jax.random.normal(k_h, (1, B, H), jnp.float32)

    out, ht = gru_forward(x, his, w_ih, w_hh, b_ih, b_hh)
    out = jax.block_until_ready(out)
    ht = jax.block_until_ready(ht)

    out_ref, ht_ref = gru_reference(x, his, w_ih, w_hh, b_ih, b_hh)
    assert out.shape == (B, H) and ht.shape == (1, B, H)
    assert jnp.allclose(out, out_ref, atol=5e-5, rtol=5e-5)
    assert jnp.allclose(ht, ht_ref, atol=5e-5, rtol=5e-5)

    print("KERNEL_OK")
</pallas_src>

<mosaic_0001>
module attributes {stable_mosaic.version = 11 : i64} {
  func.func @_gru_kernel(%arg0: i32, %arg1: memref<64x16xf32, #tpu.memory_space<vmem>>, %arg2: memref<16x192xf32, #tpu.memory_space<vmem>>, %arg3: memref<64x192xf32, #tpu.memory_space<vmem>>, %arg4: memref<1x192xf32, #tpu.memory_space<vmem>>, %arg5: memref<1x64xf32, #tpu.memory_space<vmem>>, %arg6: memref<8x64xf32, #tpu.memory_space<vmem>>, %arg7: memref<8x64xf32, #tpu.memory_space<vmem>>, %arg8: memref<64x192xf32, #tpu.memory_space<vmem>>) attributes {dimension_semantics = [#tpu.dimension_semantics<arbitrary>], iteration_bounds = array<i64: 1>, scalar_prefetch = 0 : i64, scratch_operands = 1 : i64, tpu.core_type = #tpu.core_type<tc>, window_params = [{pipeline_mode = #tpu.pipeline_mode<synchronous>, transform_indices = @transform_0, window_bounds = array<i64: 64, 16>}, {pipeline_mode = #tpu.pipeline_mode<synchronous>, transform_indices = @transform_1, window_bounds = array<i64: 16, 192>}, {pipeline_mode = #tpu.pipeline_mode<synchronous>, transform_indices = @transform_2, window_bounds = array<i64: 64, 192>}, {pipeline_mode = #tpu.pipeline_mode<synchronous>, transform_indices = @transform_3, window_bounds = array<i64: 1, 192>}, {pipeline_mode = #tpu.pipeline_mode<synchronous>, transform_indices = @transform_4, window_bounds = array<i64: 1, 64>}, {pipeline_mode = #tpu.pipeline_mode<synchronous>, transform_indices = @transform_5, window_bounds = array<i64: 8, 64>}, {pipeline_mode = #tpu.pipeline_mode<synchronous>, transform_indices = @transform_6, window_bounds = array<i64: 8, 64>}]} {
    %c0 = arith.constant 0 : index
    %c0_0 = arith.constant 0 : index
    %0 = vector.load %arg1[%c0, %c0_0] : memref<64x16xf32, #tpu.memory_space<vmem>>, vector<64x16xf32>
    %c0_1 = arith.constant 0 : index
    %c0_2 = arith.constant 0 : index
    %1 = vector.load %arg2[%c0_1, %c0_2] : memref<16x192xf32, #tpu.memory_space<vmem>>, vector<16x192xf32>
    %cst = arith.constant dense<0.000000e+00> : vector<64x192xf32>
    %2 = tpu.matmul %0, %1, %cst {dimension_numbers = #tpu.dot_dimension_numbers<[1], [0], [0], [1], [0, 0, 1, 1], [], []>} : vector<64x16xf32>, vector<16x192xf32>, vector<64x192xf32> -> vector<64x192xf32>
    %c0_3 = arith.constant 0 : index
    %c0_4 = arith.constant 0 : index
    %3 = vector.load %arg4[%c0_3, %c0_4] : memref<1x192xf32, #tpu.memory_space<vmem>>, vector<1x192xf32>
    %4 = vector.broadcast %3 : vector<1x192xf32> to vector<64x192xf32>
    %5 = arith.addf %2, %4 : vector<64x192xf32>
    %c0_5 = arith.constant 0 : index
    %c0_6 = arith.constant 0 : index
    %6 = vector.load %arg8[%c0_5, %c0_6] : memref<64x192xf32, #tpu.memory_space<vmem>>, vector<64x192xf32>
    tpu.vector_store %arg8[%c0_5, %c0_6], %5 {strides = array<i32>} : memref<64x192xf32, #tpu.memory_space<vmem>>, vector<64x192xf32>,
    %c0_7 = arith.constant 0 : index
    %c0_8 = arith.constant 0 : index
    %7 = vector.load %arg3[%c0_7, %c0_8] : memref<64x192xf32, #tpu.memory_space<vmem>>, vector<64x192xf32>
    %c0_9 = arith.constant 0 : index
    %c0_10 = arith.constant 0 : index
    %8 = vector.load %arg5[%c0_9, %c0_10] : memref<1x64xf32, #tpu.memory_space<vmem>>, vector<1x64xf32>
    %9 = vector.shape_cast %8 : vector<1x64xf32> to vector<1x64xf32>
    %10 = vector.broadcast %9 : vector<1x64xf32> to vector<8x64xf32>
    %c0_11 = arith.constant 0 : index
    %c0_12 = arith.constant 0 : index
    %11 = vector.load %arg6[%c0_11, %c0_12] : memref<8x64xf32, #tpu.memory_space<vmem>>, vector<8x64xf32>
    %c0_i32 = arith.constant 0 : i32
    %c8_i32 = arith.constant 8 : i32
    %12 = arith.muli %c0_i32, %c8_i32 : i32
    %13 = tpu.assume_multiple %12, 8 : i32
    %14 = arith.index_cast %13 : i32 to index
    %c0_13 = arith.constant 0 : index
    %15 = vector.load %arg8[%14, %c0_13] : memref<64x192xf32, #tpu.memory_space<vmem>>, vector<8x192xf32>
    %cst_14 = arith.constant dense<0.000000e+00> : vector<8x192xf32>
    %16 = tpu.matmul %11, %7, %cst_14 {dimension_numbers = #tpu.dot_dimension_numbers<[1], [0], [0], [1], [0, 0, 1, 1], [], []>} : vector<8x64xf32>, vector<64x192xf32>, vector<8x192xf32> -> vector<8x192xf32>
    %17 = vector.extract_strided_slice %15 {offsets = [0, 0], sizes = [8, 128], strides = [1, 1]} : vector<8x192xf32> to vector<8x128xf32>
    %18 = vector.extract_strided_slice %16 {offsets = [0, 0], sizes = [8, 128], strides = [1, 1]} : vector<8x192xf32> to vector<8x128xf32>
    %19 = arith.addf %17, %18 : vector<8x128xf32>
    %20 = arith.negf %19 : vector<8x128xf32>
    %21 = math.exp %20 : vector<8x128xf32>
    %cst_15 = arith.constant 1.000000e+00 : f32
    %22 = vector.broadcast %cst_15 : f32 to vector<8x128xf32>
    %23 = arith.addf %22, %21 : vector<8x128xf32>
    %24 = arith.divf %22, %23 : vector<8x128xf32>
    %25 = vector.extract_strided_slice %24 {offsets = [0, 0], sizes = [8, 64], strides = [1, 1]} : vector<8x128xf32> to vector<8x64xf32>
    %26 = vector.extract_strided_slice %24 {offsets = [0, 64], sizes = [8, 64], strides = [1, 1]} : vector<8x128xf32> to vector<8x64xf32>
    %27 = vector.extract_strided_slice %15 {offsets = [0, 128], sizes = [8, 64], strides = [1, 1]} : vector<8x192xf32> to vector<8x64xf32>
    %28 = vector.extract_strided_slice %16 {offsets = [0, 128], sizes = [8, 64], strides = [1, 1]} : vector<8x192xf32> to vector<8x64xf32>
    %29 = arith.addf %28, %10 : vector<8x64xf32>
    %30 = arith.mulf %25, %29 : vector<8x64xf32>
    %31 = arith.addf %27, %30 : vector<8x64xf32>
    %32 = math.tanh %31 : vector<8x64xf32>
    %cst_16 = arith.constant 1.000000e+00 : f32
    %33 = vector.broadcast %cst_16 : f32 to vector<8x64xf32>
    %34 = arith.subf %33, %26 : vector<8x64xf32>
    %35 = arith.mulf %34, %32 : vector<8x64xf32>
    %36 = arith.mulf %26, %11 : vector<8x64xf32>
    %37 = arith.addf %35, %36 : vector<8x64xf32>
    %c1_i32 = arith.constant 1 : i32
    %c8_i32_17 = arith.constant 8 : i32
    %38 = arith.muli %c1_i32, %c8_i32_17 : i32
    %39 = tpu.assume_multiple %38, 8 : i32
    %40 = arith.index_cast %39 : i32 to index
    %c0_18 = arith.constant 0 : index
    %41 = vector.load %arg8[%40, %c0_18] : memref<64x192xf32, #tpu.memory_space<vmem>>, vector<8x192xf32>
    %cst_19 = arith.constant dense<0.000000e+00> : vector<8x192xf32>
    %42 = tpu.matmul %37, %7, %cst_19 {dimension_numbers = #tpu.dot_dimension_numbers<[1], [0], [0], [1], [0, 0, 1, 1], [], []>} : vector<8x64xf32>, vector<64x192xf32>, vector<8x192xf32> -> vector<8x192xf32>
    %43 = vector.extract_strided_slice %41 {offsets = [0, 0], sizes = [8, 128], strides = [1, 1]} : vector<8x192xf32> to vector<8x128xf32>
    %44 = vector.extract_strided_slice %42 {offsets = [0, 0], sizes = [8, 128], strides = [1, 1]} : vector<8x192xf32> to vector<8x128xf32>
    %45 = arith.addf %43, %44 : vector<8x128xf32>
    %46 = arith.negf %45 : vector<8x128xf32>
    %47 = math.exp %46 : vector<8x128xf32>
    %cst_20 = arith.constant 1.000000e+00 : f32
    %48 = vector.broadcast %cst_20 : f32 to vector<8x128xf32>
    %49 = arith.addf %48, %47 : vector<8x128xf32>
    %50 = arith.divf %48, %49 : vector<8x128xf32>
    %51 = vector.extract_strided_slice %50 {offsets = [0, 0], sizes = [8, 64], strides = [1, 1]} : vector<8x128xf32> to vector<8x64xf32>
    %52 = vector.extract_strided_slice %50 {offsets = [0, 64], sizes = [8, 64], strides = [1, 1]} : vector<8x128xf32> to vector<8x64xf32>
    %53 = vector.extract_strided_slice %41 {offsets = [0, 128], sizes = [8, 64], strides = [1, 1]} : vector<8x192xf32> to vector<8x64xf32>
    %54 = vector.extract_strided_slice %42 {offsets = [0, 128], sizes = [8, 64], strides = [1, 1]} : vector<8x192xf32> to vector<8x64xf32>
    %55 = arith.addf %54, %10 : vector<8x64xf32>
    %56 = arith.mulf %51, %55 : vector<8x64xf32>
    %57 = arith.addf %53, %56 : vector<8x64xf32>
    %58 = math.tanh %57 : vector<8x64xf32>
    %cst_21 = arith.constant 1.000000e+00 : f32
    %59 = vector.broadcast %cst_21 : f32 to vector<8x64xf32>
    %60 = arith.subf %59, %52 : vector<8x64xf32>
    %61 = arith.mulf %60, %58 : vector<8x64xf32>
    %62 = arith.mulf %52, %37 : vector<8x64xf32>
    %63 = arith.addf %61, %62 : vector<8x64xf32>
    %c2_i32 = arith.constant 2 : i32
    %c8_i32_22 = arith.constant 8 : i32
    %64 = arith.muli %c2_i32, %c8_i32_22 : i32
    %65 = tpu.assume_multiple %64, 8 : i32
    %66 = arith.index_cast %65 : i32 to index
    %c0_23 = arith.constant 0 : index
    %67 = vector.load %arg8[%66, %c0_23] : memref<64x192xf32, #tpu.memory_space<vmem>>, vector<8x192xf32>
    %cst_24 = arith.constant dense<0.000000e+00> : vector<8x192xf32>
    %68 = tpu.matmul %63, %7, %cst_24 {dimension_numbers = #tpu.dot_dimension_numbers<[1], [0], [0], [1], [0, 0, 1, 1], [], []>} : vector<8x64xf32>, vector<64x192xf32>, vector<8x192xf32> -> vector<8x192xf32>
    %69 = vector.extract_strided_slice %67 {offsets = [0, 0], sizes = [8, 128], strides = [1, 1]} : vector<8x192xf32> to vector<8x128xf32>
    %70 = vector.extract_strided_slice %68 {offsets = [0, 0], sizes = [8, 128], strides = [1, 1]} : vector<8x192xf32> to vector<8x128xf32>
    %71 = arith.addf %69, %70 : vector<8x128xf32>
    %72 = arith.negf %71 : vector<8x128xf32>
    %73 = math.exp %72 : vector<8x128xf32>
    %cst_25 = arith.constant 1.000000e+00 : f32
    %74 = vector.broadcast %cst_25 : f32 to vector<8x128xf32>
    %75 = arith.addf %74, %73 : vector<8x128xf32>
    %76 = arith.divf %74, %75 : vector<8x128xf32>
    %77 = vector.extract_strided_slice %76 {offsets = [0, 0], sizes = [8, 64], strides = [1, 1]} : vector<8x128xf32> to vector<8x64xf32>
    %78 = vector.extract_strided_slice %76 {offsets = [0, 64], sizes = [8, 64], strides = [1, 1]} : vector<8x128xf32> to vector<8x64xf32>
    %79 = vector.extract_strided_slice %67 {offsets = [0, 128], sizes = [8, 64], strides = [1, 1]} : vector<8x192xf32> to vector<8x64xf32>
    %80 = vector.extract_strided_slice %68 {offsets = [0, 128], sizes = [8, 64], strides = [1, 1]} : vector<8x192xf32> to vector<8x64xf32>
    %81 = arith.addf %80, %10 : vector<8x64xf32>
    %82 = arith.mulf %77, %81 : vector<8x64xf32>
    %83 = arith.addf %79, %82 : vector<8x64xf32>
    %84 = math.tanh %83 : vector<8x64xf32>
    %cst_26 = arith.constant 1.000000e+00 : f32
    %85 = vector.broadcast %cst_26 : f32 to vector<8x64xf32>
    %86 = arith.subf %85, %78 : vector<8x64xf32>
    %87 = arith.mulf %86, %84 : vector<8x64xf32>
    %88 = arith.mulf %78, %63 : vector<8x64xf32>
    %89 = arith.addf %87, %88 : vector<8x64xf32>
    %c3_i32 = arith.constant 3 : i32
    %c8_i32_27 = arith.constant 8 : i32
    %90 = arith.muli %c3_i32, %c8_i32_27 : i32
    %91 = tpu.assume_multiple %90, 8 : i32
    %92 = arith.index_cast %91 : i32 to index
    %c0_28 = arith.constant 0 : index
    %93 = vector.load %arg8[%92, %c0_28] : memref<64x192xf32, #tpu.memory_space<vmem>>, vector<8x192xf32>
    %cst_29 = arith.constant dense<0.000000e+00> : vector<8x192xf32>
    %94 = tpu.matmul %89, %7, %cst_29 {dimension_numbers = #tpu.dot_dimension_numbers<[1], [0], [0], [1], [0, 0, 1, 1], [], []>} : vector<8x64xf32>, vector<64x192xf32>, vector<8x192xf32> -> vector<8x192xf32>
    %95 = vector.extract_strided_slice %93 {offsets = [0, 0], sizes = [8, 128], strides = [1, 1]} : vector<8x192xf32> to vector<8x128xf32>
    %96 = vector.extract_strided_slice %94 {offsets = [0, 0], sizes = [8, 128], strides = [1, 1]} : vector<8x192xf32> to vector<8x128xf32>
    %97 = arith.addf %95, %96 : vector<8x128xf32>
    %98 = arith.negf %97 : vector<8x128xf32>
    %99 = math.exp %98 : vector<8x128xf32>
    %cst_30 = arith.constant 1.000000e+00 : f32
    %100 = vector.broadcast %cst_30 : f32 to vector<8x128xf32>
    %101 = arith.addf %100, %99 : vector<8x128xf32>
    %102 = arith.divf %100, %101 : vector<8x128xf32>
    %103 = vector.extract_strided_slice %102 {offsets = [0, 0], sizes = [8, 64], strides = [1, 1]} : vector<8x128xf32> to vector<8x64xf32>
    %104 = vector.extract_strided_slice %102 {offsets = [0, 64], sizes = [8, 64], strides = [1, 1]} : vector<8x128xf32> to vector<8x64xf32>
    %105 = vector.extract_strided_slice %93 {offsets = [0, 128], sizes = [8, 64], strides = [1, 1]} : vector<8x192xf32> to vector<8x64xf32>
    %106 = vector.extract_strided_slice %94 {offsets = [0, 128], sizes = [8, 64], strides = [1, 1]} : vector<8x192xf32> to vector<8x64xf32>
    %107 = arith.addf %106, %10 : vector<8x64xf32>
    %108 = arith.mulf %103, %107 : vector<8x64xf32>
    %109 = arith.addf %105, %108 : vector<8x64xf32>
    %110 = math.tanh %109 : vector<8x64xf32>
    %cst_31 = arith.constant 1.000000e+00 : f32
    %111 = vector.broadcast %cst_31 : f32 to vector<8x64xf32>
    %112 = arith.subf %111, %104 : vector<8x64xf32>
    %113 = arith.mulf %112, %110 : vector<8x64xf32>
    %114 = arith.mulf %104, %89 : vector<8x64xf32>
    %115 = arith.addf %113, %114 : vector<8x64xf32>
    %c4_i32 = arith.constant 4 : i32
    %c8_i32_32 = arith.constant 8 : i32
    %116 = arith.muli %c4_i32, %c8_i32_32 : i32
    %117 = tpu.assume_multiple %116, 8 : i32
    %118 = arith.index_cast %117 : i32 to index
    %c0_33 = arith.constant 0 : index
    %119 = vector.load %arg8[%118, %c0_33] : memref<64x192xf32, #tpu.memory_space<vmem>>, vector<8x192xf32>
    %cst_34 = arith.constant dense<0.000000e+00> : vector<8x192xf32>
    %120 = tpu.matmul %115, %7, %cst_34 {dimension_numbers = #tpu.dot_dimension_numbers<[1], [0], [0], [1], [0, 0, 1, 1], [], []>} : vector<8x64xf32>, vector<64x192xf32>, vector<8x192xf32> -> vector<8x192xf32>
    %121 = vector.extract_strided_slice %119 {offsets = [0, 0], sizes = [8, 128], strides = [1, 1]} : vector<8x192xf32> to vector<8x128xf32>
    %122 = vector.extract_strided_slice %120 {offsets = [0, 0], sizes = [8, 128], strides = [1, 1]} : vector<8x192xf32> to vector<8x128xf32>
    %123 = arith.addf %121, %122 : vector<8x128xf32>
    %124 = arith.negf %123 : vector<8x128xf32>
    %125 = math.exp %124 : vector<8x128xf32>
    %cst_35 = arith.constant 1.000000e+00 : f32
    %126 = vector.broadcast %cst_35 : f32 to vector<8x128xf32>
    %127 = arith.addf %126, %125 : vector<8x128xf32>
    %128 = arith.divf %126, %127 : vector<8x128xf32>
    %129 = vector.extract_strided_slice %128 {offsets = [0, 0], sizes = [8, 64], strides = [1, 1]} : vector<8x128xf32> to vector<8x64xf32>
    %130 = vector.extract_strided_slice %128 {offsets = [0, 64], sizes = [8, 64], strides = [1, 1]} : vector<8x128xf32> to vector<8x64xf32>
    %131 = vector.extract_strided_slice %119 {offsets = [0, 128], sizes = [8, 64], strides = [1, 1]} : vector<8x192xf32> to vector<8x64xf32>
    %132 = vector.extract_strided_slice %120 {offsets = [0, 128], sizes = [8, 64], strides = [1, 1]} : vector<8x192xf32> to vector<8x64xf32>
    %133 = arith.addf %132, %10 : vector<8x64xf32>
    %134 = arith.mulf %129, %133 : vector<8x64xf32>
    %135 = arith.addf %131, %134 : vector<8x64xf32>
    %136 = math.tanh %135 : vector<8x64xf32>
    %cst_36 = arith.constant 1.000000e+00 : f32
    %137 = vector.broadcast %cst_36 : f32 to vector<8x64xf32>
    %138 = arith.subf %137, %130 : vector<8x64xf32>
    %139 = arith.mulf %138, %136 : vector<8x64xf32>
    %140 = arith.mulf %130, %115 : vector<8x64xf32>
    %141 = arith.addf %139, %140 : vector<8x64xf32>
    %c5_i32 = arith.constant 5 : i32
    %c8_i32_37 = arith.constant 8 : i32
    %142 = arith.muli %c5_i32, %c8_i32_37 : i32
    %143 = tpu.assume_multiple %142, 8 : i32
    %144 = arith.index_cast %143 : i32 to index
    %c0_38 = arith.constant 0 : index
    %145 = vector.load %arg8[%144, %c0_38] : memref<64x192xf32, #tpu.memory_space<vmem>>, vector<8x192xf32>
    %cst_39 = arith.constant dense<0.000000e+00> : vector<8x192xf32>
    %146 = tpu.matmul %141, %7, %cst_39 {dimension_numbers = #tpu.dot_dimension_numbers<[1], [0], [0], [1], [0, 0, 1, 1], [], []>} : vector<8x64xf32>, vector<64x192xf32>, vector<8x192xf32> -> vector<8x192xf32>
    %147 = vector.extract_strided_slice %145 {offsets = [0, 0], sizes = [8, 128], strides = [1, 1]} : vector<8x192xf32> to vector<8x128xf32>
    %148 = vector.extract_strided_slice %146 {offsets = [0, 0], sizes = [8, 128], strides = [1, 1]} : vector<8x192xf32> to vector<8x128xf32>
    %149 = arith.addf %147, %148 : vector<8x128xf32>
    %150 = arith.negf %149 : vector<8x128xf32>
    %151 = math.exp %150 : vector<8x128xf32>
    %cst_40 = arith.constant 1.000000e+00 : f32
    %152 = vector.broadcast %cst_40 : f32 to vector<8x128xf32>
    %153 = arith.addf %152, %151 : vector<8x128xf32>
    %154 = arith.divf %152, %153 : vector<8x128xf32>
    %155 = vector.extract_strided_slice %154 {offsets = [0, 0], sizes = [8, 64], strides = [1, 1]} : vector<8x128xf32> to vector<8x64xf32>
    %156 = vector.extract_strided_slice %154 {offsets = [0, 64], sizes = [8, 64], strides = [1, 1]} : vector<8x128xf32> to vector<8x64xf32>
    %157 = vector.extract_strided_slice %145 {offsets = [0, 128], sizes = [8, 64], strides = [1, 1]} : vector<8x192xf32> to vector<8x64xf32>
    %158 = vector.extract_strided_slice %146 {offsets = [0, 128], sizes = [8, 64], strides = [1, 1]} : vector<8x192xf32> to vector<8x64xf32>
    %159 = arith.addf %158, %10 : vector<8x64xf32>
    %160 = arith.mulf %155, %159 : vector<8x64xf32>
    %161 = arith.addf %157, %160 : vector<8x64xf32>
    %162 = math.tanh %161 : vector<8x64xf32>
    %cst_41 = arith.constant 1.000000e+00 : f32
    %163 = vector.broadcast %cst_41 : f32 to vector<8x64xf32>
    %164 = arith.subf %163, %156 : vector<8x64xf32>
    %165 = arith.mulf %164, %162 : vector<8x64xf32>
    %166 = arith.mulf %156, %141 : vector<8x64xf32>
    %167 = arith.addf %165, %166 : vector<8x64xf32>
    %c6_i32 = arith.constant 6 : i32
    %c8_i32_42 = arith.constant 8 : i32
    %168 = arith.muli %c6_i32, %c8_i32_42 : i32
    %169 = tpu.assume_multiple %168, 8 : i32
    %170 = arith.index_cast %169 : i32 to index
    %c0_43 = arith.constant 0 : index
    %171 = vector.load %arg8[%170, %c0_43] : memref<64x192xf32, #tpu.memory_space<vmem>>, vector<8x192xf32>
    %cst_44 = arith.constant dense<0.000000e+00> : vector<8x192xf32>
    %172 = tpu.matmul %167, %7, %cst_44 {dimension_numbers = #tpu.dot_dimension_numbers<[1], [0], [0], [1], [0, 0, 1, 1], [], []>} : vector<8x64xf32>, vector<64x192xf32>, vector<8x192xf32> -> vector<8x192xf32>
    %173 = vector.extract_strided_slice %171 {offsets = [0, 0], sizes = [8, 128], strides = [1, 1]} : vector<8x192xf32> to vector<8x128xf32>
    %174 = vector.extract_strided_slice %172 {offsets = [0, 0], sizes = [8, 128], strides = [1, 1]} : vector<8x192xf32> to vector<8x128xf32>
    %175 = arith.addf %173, %174 : vector<8x128xf32>
    %176 = arith.negf %175 : vector<8x128xf32>
    %177 = math.exp %176 : vector<8x128xf32>
    %cst_45 = arith.constant 1.000000e+00 : f32
    %178 = vector.broadcast %cst_45 : f32 to vector<8x128xf32>
    %179 = arith.addf %178, %177 : vector<8x128xf32>
    %180 = arith.divf %178, %179 : vector<8x128xf32>
    %181 = vector.extract_strided_slice %180 {offsets = [0, 0], sizes = [8, 64], strides = [1, 1]} : vector<8x128xf32> to vector<8x64xf32>
    %182 = vector.extract_strided_slice %180 {offsets = [0, 64], sizes = [8, 64], strides = [1, 1]} : vector<8x128xf32> to vector<8x64xf32>
    %183 = vector.extract_strided_slice %171 {offsets = [0, 128], sizes = [8, 64], strides = [1, 1]} : vector<8x192xf32> to vector<8x64xf32>
    %184 = vector.extract_strided_slice %172 {offsets = [0, 128], sizes = [8, 64], strides = [1, 1]} : vector<8x192xf32> to vector<8x64xf32>
    %185 = arith.addf %184, %10 : vector<8x64xf32>
    %186 = arith.mulf %181, %185 : vector<8x64xf32>
    %187 = arith.addf %183, %186 : vector<8x64xf32>
    %188 = math.tanh %187 : vector<8x64xf32>
    %cst_46 = arith.constant 1.000000e+00 : f32
    %189 = vector.broadcast %cst_46 : f32 to vector<8x64xf32>
    %190 = arith.subf %189, %182 : vector<8x64xf32>
    %191 = arith.mulf %190, %188 : vector<8x64xf32>
    %192 = arith.mulf %182, %167 : vector<8x64xf32>
    %193 = arith.addf %191, %192 : vector<8x64xf32>
    %c7_i32 = arith.constant 7 : i32
    %c8_i32_47 = arith.constant 8 : i32
    %194 = arith.muli %c7_i32, %c8_i32_47 : i32
    %195 = tpu.assume_multiple %194, 8 : i32
    %196 = arith.index_cast %195 : i32 to index
    %c0_48 = arith.constant 0 : index
    %197 = vector.load %arg8[%196, %c0_48] : memref<64x192xf32, #tpu.memory_space<vmem>>, vector<8x192xf32>
    %cst_49 = arith.constant dense<0.000000e+00> : vector<8x192xf32>
    %198 = tpu.matmul %193, %7, %cst_49 {dimension_numbers = #tpu.dot_dimension_numbers<[1], [0], [0], [1], [0, 0, 1, 1], [], []>} : vector<8x64xf32>, vector<64x192xf32>, vector<8x192xf32> -> vector<8x192xf32>
    %199 = vector.extract_strided_slice %197 {offsets = [0, 0], sizes = [8, 128], strides = [1, 1]} : vector<8x192xf32> to vector<8x128xf32>
    %200 = vector.extract_strided_slice %198 {offsets = [0, 0], sizes = [8, 128], strides = [1, 1]} : vector<8x192xf32> to vector<8x128xf32>
    %201 = arith.addf %199, %200 : vector<8x128xf32>
    %202 = arith.negf %201 : vector<8x128xf32>
    %203 = math.exp %202 : vector<8x128xf32>
    %cst_50 = arith.constant 1.000000e+00 : f32
    %204 = vector.broadcast %cst_50 : f32 to vector<8x128xf32>
    %205 = arith.addf %204, %203 : vector<8x128xf32>
    %206 = arith.divf %204, %205 : vector<8x128xf32>
    %207 = vector.extract_strided_slice %206 {offsets = [0, 0], sizes = [8, 64], strides = [1, 1]} : vector<8x128xf32> to vector<8x64xf32>
    %208 = vector.extract_strided_slice %206 {offsets = [0, 64], sizes = [8, 64], strides = [1, 1]} : vector<8x128xf32> to vector<8x64xf32>
    %209 = vector.extract_strided_slice %197 {offsets = [0, 128], sizes = [8, 64], strides = [1, 1]} : vector<8x192xf32> to vector<8x64xf32>
    %210 = vector.extract_strided_slice %198 {offsets = [0, 128], sizes = [8, 64], strides = [1, 1]} : vector<8x192xf32> to vector<8x64xf32>
    %211 = arith.addf %210, %10 : vector<8x64xf32>
    %212 = arith.mulf %207, %211 : vector<8x64xf32>
    %213 = arith.addf %209, %212 : vector<8x64xf32>
    %214 = math.tanh %213 : vector<8x64xf32>
    %cst_51 = arith.constant 1.000000e+00 : f32
    %215 = vector.broadcast %cst_51 : f32 to vector<8x64xf32>
    %216 = arith.subf %215, %208 : vector<8x64xf32>
    %217 = arith.mulf %216, %214 : vector<8x64xf32>
    %218 = arith.mulf %208, %193 : vector<8x64xf32>
    %219 = arith.addf %217, %218 : vector<8x64xf32>
    %c8_i32_52 = arith.constant 8 : i32
    %c0_53 = arith.constant 0 : index
    %c0_54 = arith.constant 0 : index
    %220 = vector.load %arg7[%c0_53, %c0_54] : memref<8x64xf32, #tpu.memory_space<vmem>>, vector<8x64xf32>
    tpu.vector_store %arg7[%c0_53, %c0_54], %219 {strides = array<i32>} : memref<8x64xf32, #tpu.memory_space<vmem>>, vector<8x64xf32>,
    return
  }
  func.func @transform_0(%arg0: i32) -> (i32, i32) {
    %c0_i32 = arith.constant 0 : i32
    %c0_i32_0 = arith.constant 0 : i32
    %c0_i32_1 = arith.constant 0 : i32
    return %c0_i32, %c0_i32_0 : i32, i32
  }
  func.func @transform_1(%arg0: i32) -> (i32, i32) {
    %c0_i32 = arith.constant 0 : i32
    %c0_i32_0 = arith.constant 0 : i32
    %c0_i32_1 = arith.constant 0 : i32
    return %c0_i32, %c0_i32_0 : i32, i32
  }
  func.func @transform_2(%arg0: i32) -> (i32, i32) {
    %c0_i32 = arith.constant 0 : i32
    %c0_i32_0 = arith.constant 0 : i32
    %c0_i32_1 = arith.constant 0 : i32
    return %c0_i32, %c0_i32_0 : i32, i32
  }
  func.func @transform_3(%arg0: i32) -> (i32, i32) {
    %c0_i32 = arith.constant 0 : i32
    %c0_i32_0 = arith.constant 0 : i32
    %c0_i32_1 = arith.constant 0 : i32
    return %c0_i32, %c0_i32_0 : i32, i32
  }
  func.func @transform_4(%arg0: i32) -> (i32, i32) {
    %c0_i32 = arith.constant 0 : i32
    %c0_i32_0 = arith.constant 0 : i32
    %c0_i32_1 = arith.constant 0 : i32
    return %c0_i32, %c0_i32_0 : i32, i32
  }
  func.func @transform_5(%arg0: i32) -> (i32, i32) {
    %c0_i32 = arith.constant 0 : i32
    %c0_i32_0 = arith.constant 0 : i32
    %c0_i32_1 = arith.constant 0 : i32
    return %c0_i32, %c0_i32_0 : i32, i32
  }
  func.func @transform_6(%arg0: i32) -> (i32, i32) {
    %c0_i32 = arith.constant 0 : i32
    %c0_i32_0 = arith.constant 0 : i32
    %c0_i32_1 = arith.constant 0 : i32
    return %c0_i32, %c0_i32_0 : i32, i32
  }
}

</mosaic_0001>

<llo_original>
// kernel: tpu_custom_call.1
$region0: #{tpu_custom_call.1}
  #allocation0 [shape = 'u32[]', space=smem, size = 0x4, offset = 0x4, fixed_abs, tag = 'smem constant byte address 0x4 - core index']
  #allocation1 [shape = 'u32[144,128]{1,0:T(1,128)}', space=vmem, size = 0x12000, scoped, tag = 'internal scratch']
  #allocation2 [shape = 'f32[64,192]{1,0:T(8,128)}', space=vmem, size = 0x10000, scoped, tag = 'scratch operand']
  %s0 = inlined_call_operand.vmem [shape: f32[64,16], index: 0, kind: input, shape index: {}]
  %s1 = inlined_call_operand.vmem [shape: f32[16,192], index: 1, kind: input, shape index: {}]
  %s2 = inlined_call_operand.hbm [shape: f32[64,192], index: 2, kind: input, shape index: {}]
  %s3 = inlined_call_operand.vmem [shape: f32[1,192], index: 3, kind: input, shape index: {}]
  %s4 = inlined_call_operand.vmem [shape: f32[1,64], index: 4, kind: input, shape index: {}]
  %s5 = inlined_call_operand.vmem [shape: f32[8,64], index: 5, kind: input, shape index: {}]
  %s6 = inlined_call_operand.hbm [shape: f32[8,64], index: 6, kind: output, shape index: {}]
  %s7 = sld [smem:[#allocation0]]
  $region38: #{tpu_custom_call.1} parent=0
    _
  %s9 = ssub.s32 1, %s7
  %s10 = scalar_select 0, %s9, %s7
  $region1: #{tpu_custom_call.1} parent=0
    #allocation3 [shape = 'u8[65536]{0}', space=vmem, size = 0x10000, scoped, tag = 'input window, operand 2, single buffered']
    #allocation4 [shape = 's32[1]{0}', space=sflag, size = 0x4, scoped, tag = 'scoped memory for tpu_custom_call.1']
    #allocation5 [shape = 's32[1]{0}', space=sflag, size = 0x4, scoped, tag = 'scoped memory for tpu_custom_call.1']
    #allocation6 [shape = 'u8[4096]{0}', space=vmem, size = 0x1000, scoped, tag = 'output window, operand 0, single buffered']
    %11 = vsyncpa [#allocation4], 0
    %12 = vsyncpa [#allocation5], 0
    // Predicated region
    $region2: #{tpu_custom_call.1} parent=1 // pred_check
      _
    $region3: #{tpu_custom_call.1} parent=1 // pred_check_branch
      %14 = sbr.rel (0) target = $region5
    $region4: #{tpu_custom_call.1} parent=1 // pred_region
      _
    $region5: #{tpu_custom_call.1} parent=1 // pred_fallthru
      _
    // Predicated region
    $region6: #{tpu_custom_call.1} parent=1 // pred_check
      _
    $region7: #{tpu_custom_call.1} parent=1 // pred_check_branch
      %16 = sbr.rel (0) target = $region9
    $region8: #{tpu_custom_call.1} parent=1 // pred_region
      _
    $region9: #{tpu_custom_call.1} parent=1 // pred_fallthru
      _
    // Predicated region
    $region10: #{tpu_custom_call.1} parent=1 // pred_check
      _
    $region11: #{tpu_custom_call.1} parent=1 // pred_check_branch
      %18 = sbr.rel (0) target = $region13
    $region12: #{tpu_custom_call.1} parent=1 // pred_region
      %s20 = ssub.s32 2048, 2048
      %21 = vsyncadd [#allocation4], %s20
      %s22 = sshll.u32 [#allocation3], 4
      %s23 = int_to_ptr.vmem [resolvable:$true] %s22
      %28 = dma.hbm_to_vmem [thread:$0]  %s2, 2048, %s23, [#allocation4], 256, 256, 16
    $region13: #{tpu_custom_call.1} parent=1 // pred_fallthru
      _
    // Predicated region
    $region14: #{tpu_custom_call.1} parent=1 // pred_check
      _
    $region15: #{tpu_custom_call.1} parent=1 // pred_check_branch
      %30 = sbr.rel (0) target = $region17
    $region16: #{tpu_custom_call.1} parent=1 // pred_region
      _
    $region17: #{tpu_custom_call.1} parent=1 // pred_fallthru
      _
    // Predicated region
    $region18: #{tpu_custom_call.1} parent=1 // pred_check
      _
    $region19: #{tpu_custom_call.1} parent=1 // pred_check_branch
      %32 = sbr.rel (0) target = $region21
    $region20: #{tpu_custom_call.1} parent=1 // pred_region
      _
    $region21: #{tpu_custom_call.1} parent=1 // pred_fallthru
      _
    // Predicated region
    $region22: #{tpu_custom_call.1} parent=1 // pred_check
      _
    $region23: #{tpu_custom_call.1} parent=1 // pred_check_branch
      %34 = sbr.rel (0) target = $region25
    $region24: #{tpu_custom_call.1} parent=1 // pred_region
      _
    $region25: #{tpu_custom_call.1} parent=1 // pred_fallthru
      _
    // Predicated region
    $region26: #{tpu_custom_call.1} parent=1 // pred_check
      _
    $region27: #{tpu_custom_call.1} parent=1 // pred_check_branch
      %36 = sbr.rel (0) target = $region29
    $region28: #{tpu_custom_call.1} parent=1 // pred_region
      %37 = dma.done [#allocation4], 2048
    $region29: #{tpu_custom_call.1} parent=1 // pred_fallthru
      _
    %v38 = vld [vmem:[%s0] sm:$0xff]
    %v39 = vld [vmem:[%s0 + $0x8] sm:$0xff]
    %v40 = vld [vmem:[%s0 + $0x10] sm:$0xff]
    %v41 = vld [vmem:[%s0 + $0x18] sm:$0xff]
    %v42 = vld [vmem:[%s0 + $0x20] sm:$0xff]
    %v43 = vld [vmem:[%s0 + $0x28] sm:$0xff]
    %v44 = vld [vmem:[%s0 + $0x30] sm:$0xff]
    %v45 = vld [vmem:[%s0 + $0x38] sm:$0xff]
    %v46 = vld [vmem:[%s1] sm:$0xff]
    %v47 = vld [vmem:[%s1 + $0x8] sm:$0xff]
    %v48 = vld [vmem:[%s1 + $0x10] sm:$0xff]
    %v49 = vld [vmem:[%s1 + $0x18] sm:$0xff]
    %v50 = vld [vmem:[%s3] sm:$0x3]
    %v52 = vlaneseq
    %v53 = vshrl.u32 %v52, 7
    %v54 = vsub.s32 0, %v53
    %v55 = vrot.slane %v50, %v54
    %v56 = vlaneseq
    %v57 = vshrl.u32 %v56, 7
    %v58 = vsub.s32 1, %v57
    %v59 = vrot.slane %v50, %v58
    %vm62 = vcmask 130048
    %v64 = vsel %vm62, %v38, 0
    %v67 = vsel %vm62, %v39, 0
    %v70 = vsel %vm62, %v40, 0
    %v73 = vsel %vm62, %v41, 0
    %v76 = vsel %vm62, %v42, 0
    %v79 = vsel %vm62, %v43, 0
    %v82 = vsel %vm62, %v44, 0
    %v85 = vsel %vm62, %v45, 0
    %87 = vmatprep.subr.mxu0 %v47
    %88 = vmatpush1.msra.mxu0 %v46
    %89 = vmatprep.subr.mxu0 %v49
    %90 = vmatpush1.msra.mxu0 %v48
    %91 = vmatprep.subr.mxu0 0.0
    %92 = vmatpush1.msra.mxu0 0.0
    %93 = vmatprep.subr.mxu0 0.0
    %94 = vmatpush1.msra.mxu0 0.0
    %95 = vmatprep.subr.mxu0 0.0
    %96 = vmatpush1.msra.mxu0 0.0
    %97 = vmatprep.subr.mxu0 0.0
    %98 = vmatpush1.msra.mxu0 0.0
    %99 = vmatprep.subr.mxu0 0.0
    %100 = vmatpush1.msra.mxu0 0.0
    %101 = vmatprep.subr.mxu0 0.0
    %102 = vmatpush1.msra.mxu0 0.0
    %103 = vmatprep.subr.mxu0 0.0
    %104 = vmatpush1.msra.mxu0 0.0
    %105 = vmatprep.subr.mxu0 0.0
    %106 = vmatpush1.msra.mxu0 0.0
    %107 = vmatprep.subr.mxu0 0.0
    %108 = vmatpush1.msra.mxu0 0.0
    %109 = vmatprep.subr.mxu0 0.0
    %110 = vmatpush1.msra.mxu0 0.0
    %111 = vmatprep.subr.mxu0 0.0
    %112 = vmatpush1.msra.mxu0 0.0
    %113 = vmatprep.subr.mxu0 0.0
    %114 = vmatpush1.msra.mxu0 0.0
    %115 = vmatprep.subr.mxu0 0.0
    %116 = vmatpush1.msra.mxu0 0.0
    %117 = vmatprep.subr.mxu0 0.0
    %118 = vmatpush1.msra.mxu0 0.0
    %119 = vmatprep.subr.mxu0 0.0
    %120 = vmatpush1.msra.mxu0 0.0
    %121 = vmatprep.subr.mxu0 0.0
    %122 = vmatpush1.msra.mxu0 0.0
    %123 = vmatprep.subr.mxu0 0.0
    %124 = vmatpush1.msra.mxu0 0.0
    %125 = vmatprep.subr.mxu0 0.0
    %126 = vmatpush1.msra.mxu0 0.0
    %127 = vmatprep.subr.mxu0 0.0
    %128 = vmatpush1.msra.mxu0 0.0
    %129 = vmatprep.subr.mxu0 0.0
    %130 = vmatpush1.msra.mxu0 0.0
    %131 = vmatprep.subr.mxu0 0.0
    %132 = vmatpush1.msra.mxu0 0.0
    %133 = vmatprep.subr.mxu0 0.0
    %134 = vmatpush1.msra.mxu0 0.0
    %135 = vmatprep.subr.mxu0 0.0
    %136 = vmatpush1.msra.mxu0 0.0
    %137 = vmatprep.subr.mxu0 0.0
    %138 = vmatpush1.msra.mxu0 0.0
    %139 = vmatprep.subr.mxu0 0.0
    %140 = vmatpush1.msra.mxu0 0.0
    %141 = vmatprep.subr.mxu0 0.0
    %142 = vmatpush1.msra.mxu0 0.0
    %143 = vmatprep.subr.mxu0 0.0
    %144 = vmatpush1.msra.mxu0 0.0
    %145 = vmatprep.subr.mxu0 0.0
    %146 = vmatpush1.msra.mxu0 0.0
    %147 = vmatprep.subr.mxu0 0.0
    %148 = vmatpush1.msra.mxu0 0.0
    %149 = vmatprep.subr.mxu0 0.0
    %150 = vmatpush1.msra.mxu0 0.0
    %151 = vmatprep.mubr.f32.mxu0 0.0
    %152 = vmatmul.mubr.f32.gmra.mrb[0].mxu0 %v64
    %v153 = vpop.f32.mrb[0].mxu0
    %v154 = vadd.f32 %v55, %v153
    %v155 = vpop.f32.mrb[0].mxu0
    %v156 = vadd.f32 %v59, %v155
    %157 = vmatprep.mubr.f32.mxu0 0.0
    %158 = vmatmul.mubr.f32.gmra.mrb[0].mxu0 %v67
    %v159 = vpop.f32.mrb[0].mxu0
    %v160 = vadd.f32 %v55, %v159
    %v161 = vpop.f32.mrb[0].mxu0
    %v162 = vadd.f32 %v59, %v161
    %163 = vmatprep.mubr.f32.mxu0 0.0
    %164 = vmatmul.mubr.f32.gmra.mrb[0].mxu0 %v70
    %v165 = vpop.f32.mrb[0].mxu0
    %v166 = vadd.f32 %v55, %v165
    %v167 = vpop.f32.mrb[0].mxu0
    %v168 = vadd.f32 %v59, %v167
    %169 = vmatprep.mubr.f32.mxu0 0.0
    %170 = vmatmul.mubr.f32.gmra.mrb[0].mxu0 %v73
    %v171 = vpop.f32.mrb[0].mxu0
    %v172 = vadd.f32 %v55, %v171
    %v173 = vpop.f32.mrb[0].mxu0
    %v174 = vadd.f32 %v59, %v173
    %175 = vmatprep.mubr.f32.mxu0 0.0
    %176 = vmatmul.mubr.f32.gmra.mrb[0].mxu0 %v76
    %v177 = vpop.f32.mrb[0].mxu0
    %v178 = vadd.f32 %v55, %v177
    %v179 = vpop.f32.mrb[0].mxu0
    %v180 = vadd.f32 %v59, %v179
    %181 = vmatprep.mubr.f32.mxu0 0.0
    %182 = vmatmul.mubr.f32.gmra.mrb[0].mxu0 %v79
    %v183 = vpop.f32.mrb[0].mxu0
    %v184 = vadd.f32 %v55, %v183
    %v185 = vpop.f32.mrb[0].mxu0
    %v186 = vadd.f32 %v59, %v185
    %187 = vmatprep.mubr.f32.mxu0 0.0
    %188 = vmatmul.mubr.f32.gmra.mrb[0].mxu0 %v82
    %v189 = vpop.f32.mrb[0].mxu0
    %v190 = vadd.f32 %v55, %v189
    %v191 = vpop.f32.mrb[0].mxu0
    %v192 = vadd.f32 %v59, %v191
    %193 = vmatprep.mubr.f32.mxu0 0.0
    %194 = vmatmul.mubr.f32.gmra.mrb[0].mxu0 %v85
    %v195 = vpop.f32.mrb[0].mxu0
    %v196 = vadd.f32 %v55, %v195
    %v197 = vpop.f32.mrb[0].mxu0
    %v198 = vadd.f32 %v59, %v197
    %199 = vdwg.mxu0
    %200 = vst [vmem:[#allocation2] sm:$0xff] %v154
    %vm201 = vcmask 523264
    %202 = vst.msk [vmem:[#allocation2 + $0x8] sm:$0xff] %vm201, %v156
    %203 = vst [vmem:[#allocation2 + $0x10] sm:$0xff] %v160
    %204 = vst.msk [vmem:[#allocation2 + $0x18] sm:$0xff] %vm201, %v162
    %205 = vst [vmem:[#allocation2 + $0x20] sm:$0xff] %v166
    %206 = vst.msk [vmem:[#allocation2 + $0x28] sm:$0xff] %vm201, %v168
    %207 = vst [vmem:[#allocation2 + $0x30] sm:$0xff] %v172
    %208 = vst.msk [vmem:[#allocation2 + $0x38] sm:$0xff] %vm201, %v174
    %209 = vst [vmem:[#allocation2 + $0x40] sm:$0xff] %v178
    %210 = vst.msk [vmem:[#allocation2 + $0x48] sm:$0xff] %vm201, %v180
    %211 = vst [vmem:[#allocation2 + $0x50] sm:$0xff] %v184
    %212 = vst.msk [vmem:[#allocation2 + $0x58] sm:$0xff] %vm201, %v186
    %213 = vst [vmem:[#allocation2 + $0x60] sm:$0xff] %v190
    %214 = vst.msk [vmem:[#allocation2 + $0x68] sm:$0xff] %vm201, %v192
    %215 = vst [vmem:[#allocation2 + $0x70] sm:$0xff] %v196
    %216 = vst.msk [vmem:[#allocation2 + $0x78] sm:$0xff] %vm201, %v198
    %v217 = vld [vmem:[#allocation3] sm:$0xff]
    %v218 = vld [vmem:[#allocation3 + $0x8] sm:$0xff]
    %v219 = vld [vmem:[#allocation3 + $0x10] sm:$0xff]
    %v220 = vld [vmem:[#allocation3 + $0x18] sm:$0xff]
    %v221 = vld [vmem:[#allocation3 + $0x20] sm:$0xff]
    %v222 = vld [vmem:[#allocation3 + $0x28] sm:$0xff]
    %v223 = vld [vmem:[#allocation3 + $0x30] sm:$0xff]
    %v224 = vld [vmem:[#allocation3 + $0x38] sm:$0xff]
    %v225 = vld [vmem:[#allocation3 + $0x40] sm:$0xff]
    %v226 = vld [vmem:[#allocation3 + $0x48] sm:$0xff]
    %v227 = vld [vmem:[#allocation3 + $0x50] sm:$0xff]
    %v228 = vld [vmem:[#allocation3 + $0x58] sm:$0xff]
    %v229 = vld [vmem:[#allocation3 + $0x60] sm:$0xff]
    %v230 = vld [vmem:[#allocation3 + $0x68] sm:$0xff]
    %v231 = vld [vmem:[#allocation3 + $0x70] sm:$0xff]
    %v232 = vld [vmem:[#allocation3 + $0x78] sm:$0xff]
    %v233 = vld [vmem:[%s4] sm:$0x1]
    %v235 = vlaneseq
    %v236 = vshrl.u32 %v235, 7
    %v237 = vsub.s32 0, %v236
    %v238 = vrot.slane %v233, %v237
    %v240 = vld [vmem:[%s5] sm:$0xff]
    %s241 = smul.u32 0, 2
    %s242 = smul.addr %s241, 8
    %s243 = scalar_lea.vmem [#allocation2], %s242
    %v244 = vld [vmem:[%s243] sm:$0xff]
    %v245 = vld [vmem:[%s243 + $0x8] sm:$0xff]
    %v247 = vsel %vm201, %v240, 0
    %249 = vmatprep.subr.mxu0 %v218
    %250 = vmatpush1.msra.mxu0 %v217
    %251 = vmatprep.subr.mxu0 %v220
    %252 = vmatpush1.msra.mxu0 %v219
    %253 = vmatprep.subr.mxu0 %v222
    %254 = vmatpush1.msra.mxu0 %v221
    %255 = vmatprep.subr.mxu0 %v224
    %256 = vmatpush1.msra.mxu0 %v223
    %257 = vmatprep.subr.mxu0 %v226
    %258 = vmatpush1.msra.mxu0 %v225
    %259 = vmatprep.subr.mxu0 %v228
    %260 = vmatpush1.msra.mxu0 %v227
    %261 = vmatprep.subr.mxu0 %v230
    %262 = vmatpush1.msra.mxu0 %v229
    %263 = vmatprep.subr.mxu0 %v232
    %264 = vmatpush1.msra.mxu0 %v231
    %265 = vmatprep.subr.mxu0 0.0
    %266 = vmatpush1.msra.mxu0 0.0
    %267 = vmatprep.subr.mxu0 0.0
    %268 = vmatpush1.msra.mxu0 0.0
    %269 = vmatprep.subr.mxu0 0.0
    %270 = vmatpush1.msra.mxu0 0.0
    %271 = vmatprep.subr.mxu0 0.0
    %272 = vmatpush1.msra.mxu0 0.0
    %273 = vmatprep.subr.mxu0 0.0
    %274 = vmatpush1.msra.mxu0 0.0
    %275 = vmatprep.subr.mxu0 0.0
    %276 = vmatpush1.msra.mxu0 0.0
    %277 = vmatprep.subr.mxu0 0.0
    %278 = vmatpush1.msra.mxu0 0.0
    %279 = vmatprep.subr.mxu0 0.0
    %280 = vmatpush1.msra.mxu0 0.0
    %281 = vmatprep.subr.mxu0 0.0
    %282 = vmatpush1.msra.mxu0 0.0
    %283 = vmatprep.subr.mxu0 0.0
    %284 = vmatpush1.msra.mxu0 0.0
    %285 = vmatprep.subr.mxu0 0.0
    %286 = vmatpush1.msra.mxu0 0.0
    %287 = vmatprep.subr.mxu0 0.0
    %288 = vmatpush1.msra.mxu0 0.0
    %289 = vmatprep.subr.mxu0 0.0
    %290 = vmatpush1.msra.mxu0 0.0
    %291 = vmatprep.subr.mxu0 0.0
    %292 = vmatpush1.msra.mxu0 0.0
    %293 = vmatprep.subr.mxu0 0.0
    %294 = vmatpush1.msra.mxu0 0.0
    %295 = vmatprep.subr.mxu0 0.0
    %296 = vmatpush1.msra.mxu0 0.0
    %297 = vmatprep.subr.mxu0 0.0
    %298 = vmatpush1.msra.mxu0 0.0
    %299 = vmatprep.subr.mxu0 0.0
    %300 = vmatpush1.msra.mxu0 0.0
    %301 = vmatprep.subr.mxu0 0.0
    %302 = vmatpush1.msra.mxu0 0.0
    %303 = vmatprep.subr.mxu0 0.0
    %304 = vmatpush1.msra.mxu0 0.0
    %305 = vmatprep.subr.mxu0 0.0
    %306 = vmatpush1.msra.mxu0 0.0
    %307 = vmatprep.subr.mxu0 0.0
    %308 = vmatpush1.msra.mxu0 0.0
    %309 = vmatprep.subr.mxu0 0.0
    %310 = vmatpush1.msra.mxu0 0.0
    %311 = vmatprep.subr.mxu0 0.0
    %312 = vmatpush1.msra.mxu0 0.0
    %313 = vmatprep.mubr.f32.mxu0 0.0
    %314 = vmatmul.mubr.f32.gmra.mrb[0].mxu0 %v247
    %v315 = vpop.f32.mrb[0].mxu0
    %v316 = vadd.f32 0.0, %v315
    %v317 = vpop.f32.mrb[0].mxu0
    %v318 = vadd.f32 0.0, %v317
    %319 = vdwg.mxu0
    %v320 = vadd.f32 %v244, %v316
    %v321 = vxor.u32 %v320, 2147483648
    %v322 = vmul.f32 %v321, 1.442695
    %v323 = vpow.pop %v322
    %v324 = vadd.f32 %v323, 1.0
    %v325 = vrcp.pop %v324
    %v326 = vmul.f32 1.0, %v325
    %v327 = vadd.f32 %v318, %v238
    %v328 = vmul.f32 %v326, %v327
    %v329 = vadd.f32 %v245, %v328
    %v330 = vtanh.pop %v329
    %v331 = vsub.f32 1.0, %v326
    %333 = vrot.lane.b32.xlu0 %v330, 64
    %v334 = vpop.permute.xlu0 %333
    %v336 = vmul.f32 %v331, %v334
    %337 = vrot.lane.b32.xlu0 %v240, 64
    %v338 = vpop.permute.xlu0 %337
    %v340 = vmul.f32 %v326, %v338
    %v341 = vadd.f32 %v336, %v340
    %s342 = smul.u32 1, 2
    %s343 = smul.addr %s342, 8
    %s344 = scalar_lea.vmem [#allocation2], %s343
    %v345 = vld [vmem:[%s344] sm:$0xff]
    %v346 = vld [vmem:[%s344 + $0x8] sm:$0xff]
    %348 = vrot.lane.b32.xlu0 %v341, 64
    %v349 = vpop.permute.xlu0 %348
    %v350 = vsel %vm201, %v349, 0
    %352 = vmatprep.subr.mxu0 %v218
    %353 = vmatpush1.msra.mxu0 %v217
    %354 = vmatprep.subr.mxu0 %v220
    %355 = vmatpush1.msra.mxu0 %v219
    %356 = vmatprep.subr.mxu0 %v222
    %357 = vmatpush1.msra.mxu0 %v221
    %358 = vmatprep.subr.mxu0 %v224
    %359 = vmatpush1.msra.mxu0 %v223
    %360 = vmatprep.subr.mxu0 %v226
    %361 = vmatpush1.msra.mxu0 %v225
    %362 = vmatprep.subr.mxu0 %v228
    %363 = vmatpush1.msra.mxu0 %v227
    %364 = vmatprep.subr.mxu0 %v230
    %365 = vmatpush1.msra.mxu0 %v229
    %366 = vmatprep.subr.mxu0 %v232
    %367 = vmatpush1.msra.mxu0 %v231
    %368 = vmatprep.subr.mxu0 0.0
    %369 = vmatpush1.msra.mxu0 0.0
    %370 = vmatprep.subr.mxu0 0.0
    %371 = vmatpush1.msra.mxu0 0.0
    %372 = vmatprep.subr.mxu0 0.0
    %373 = vmatpush1.msra.mxu0 0.0
    %374 = vmatprep.subr.mxu0 0.0
    %375 = vmatpush1.msra.mxu0 0.0
    %376 = vmatprep.subr.mxu0 0.0
    %377 = vmatpush1.msra.mxu0 0.0
    %378 = vmatprep.subr.mxu0 0.0
    %379 = vmatpush1.msra.mxu0 0.0
    %380 = vmatprep.subr.mxu0 0.0
    %381 = vmatpush1.msra.mxu0 0.0
    %382 = vmatprep.subr.mxu0 0.0
    %383 = vmatpush1.msra.mxu0 0.0
    %384 = vmatprep.subr.mxu0 0.0
    %385 = vmatpush1.msra.mxu0 0.0
    %386 = vmatprep.subr.mxu0 0.0
    %387 = vmatpush1.msra.mxu0 0.0
    %388 = vmatprep.subr.mxu0 0.0
    %389 = vmatpush1.msra.mxu0 0.0
    %390 = vmatprep.subr.mxu0 0.0
    %391 = vmatpush1.msra.mxu0 0.0
    %392 = vmatprep.subr.mxu0 0.0
    %393 = vmatpush1.msra.mxu0 0.0
    %394 = vmatprep.subr.mxu0 0.0
    %395 = vmatpush1.msra.mxu0 0.0
    %396 = vmatprep.subr.mxu0 0.0
    %397 = vmatpush1.msra.mxu0 0.0
    %398 = vmatprep.subr.mxu0 0.0
    %399 = vmatpush1.msra.mxu0 0.0
    %400 = vmatprep.subr.mxu0 0.0
    %401 = vmatpush1.msra.mxu0 0.0
    %402 = vmatprep.subr.mxu0 0.0
    %403 = vmatpush1.msra.mxu0 0.0
    %404 = vmatprep.subr.mxu0 0.0
    %405 = vmatpush1.msra.mxu0 0.0
    %406 = vmatprep.subr.mxu0 0.0
    %407 = vmatpush1.msra.mxu0 0.0
    %408 = vmatprep.subr.mxu0 0.0
    %409 = vmatpush1.msra.mxu0 0.0
    %410 = vmatprep.subr.mxu0 0.0
    %411 = vmatpush1.msra.mxu0 0.0
    %412 = vmatprep.subr.mxu0 0.0
    %413 = vmatpush1.msra.mxu0 0.0
    %414 = vmatprep.subr.mxu0 0.0
    %415 = vmatpush1.msra.mxu0 0.0
    %416 = vmatprep.mubr.f32.mxu0 0.0
    %417 = vmatmul.mubr.f32.gmra.mrb[0].mxu0 %v350
    %v418 = vpop.f32.mrb[0].mxu0
    %v419 = vadd.f32 0.0, %v418
    %v420 = vpop.f32.mrb[0].mxu0
    %v421 = vadd.f32 0.0, %v420
    %422 = vdwg.mxu0
    %v423 = vadd.f32 %v345, %v419
    %v424 = vxor.u32 %v423, 2147483648
    %v425 = vmul.f32 %v424, 1.442695
    %v426 = vpow.pop %v425
    %v427 = vadd.f32 %v426, 1.0
    %v428 = vrcp.pop %v427
    %v429 = vmul.f32 1.0, %v428
    %v430 = vadd.f32 %v421, %v238
    %v431 = vmul.f32 %v429, %v430
    %v432 = vadd.f32 %v346, %v431
    %v433 = vtanh.pop %v432
    %v434 = vsub.f32 1.0, %v429
    %436 = vrot.lane.b32.xlu0 %v433, 64
    %v437 = vpop.permute.xlu0 %436
    %v439 = vmul.f32 %v434, %v437
    %v440 = vmul.f32 %v429, %v341
    %v441 = vadd.f32 %v439, %v440
    %s442 = smul.u32 2, 2
    %s443 = smul.addr %s442, 8
    %s444 = scalar_lea.vmem [#allocation2], %s443
    %v445 = vld [vmem:[%s444] sm:$0xff]
    %v446 = vld [vmem:[%s444 + $0x8] sm:$0xff]
    %448 = vrot.lane.b32.xlu0 %v441, 64
    %v449 = vpop.permute.xlu0 %448
    %v450 = vsel %vm201, %v449, 0
    %452 = vmatprep.subr.mxu0 %v218
    %453 = vmatpush1.msra.mxu0 %v217
    %454 = vmatprep.subr.mxu0 %v220
    %455 = vmatpush1.msra.mxu0 %v219
    %456 = vmatprep.subr.mxu0 %v222
    %457 = vmatpush1.msra.mxu0 %v221
    %458 = vmatprep.subr.mxu0 %v224
    %459 = vmatpush1.msra.mxu0 %v223
    %460 = vmatprep.subr.mxu0 %v226
    %461 = vmatpush1.msra.mxu0 %v225
    %462 = vmatprep.subr.mxu0 %v228
    %463 = vmatpush1.msra.mxu0 %v227
    %464 = vmatprep.subr.mxu0 %v230
    %465 = vmatpush1.msra.mxu0 %v229
    %466 = vmatprep.subr.mxu0 %v232
    %467 = vmatpush1.msra.mxu0 %v231
    %468 = vmatprep.subr.mxu0 0.0
    %469 = vmatpush1.msra.mxu0 0.0
    %470 = vmatprep.subr.mxu0 0.0
    %471 = vmatpush1.msra.mxu0 0.0
    %472 = vmatprep.subr.mxu0 0.0
    %473 = vmatpush1.msra.mxu0 0.0
    %474 = vmatprep.subr.mxu0 0.0
    %475 = vmatpush1.msra.mxu0 0.0
    %476 = vmatprep.subr.mxu0 0.0
    %477 = vmatpush1.msra.mxu0 0.0
    %478 = vmatprep.subr.mxu0 0.0
    %479 = vmatpush1.msra.mxu0 0.0
    %480 = vmatprep.subr.mxu0 0.0
    %481 = vmatpush1.msra.mxu0 0.0
    %482 = vmatprep.subr.mxu0 0.0
    %483 = vmatpush1.msra.mxu0 0.0
    %484 = vmatprep.subr.mxu0 0.0
    %485 = vmatpush1.msra.mxu0 0.0
    %486 = vmatprep.subr.mxu0 0.0
    %487 = vmatpush1.msra.mxu0 0.0
    %488 = vmatprep.subr.mxu0 0.0
    %489 = vmatpush1.msra.mxu0 0.0
    %490 = vmatprep.subr.mxu0 0.0
    %491 = vmatpush1.msra.mxu0 0.0
    %492 = vmatprep.subr.mxu0 0.0
    %493 = vmatpush1.msra.mxu0 0.0
    %494 = vmatprep.subr.mxu0 0.0
    %495 = vmatpush1.msra.mxu0 0.0
    %496 = vmatprep.subr.mxu0 0.0
    %497 = vmatpush1.msra.mxu0 0.0
    %498 = vmatprep.subr.mxu0 0.0
    %499 = vmatpush1.msra.mxu0 0.0
    %500 = vmatprep.subr.mxu0 0.0
    %501 = vmatpush1.msra.mxu0 0.0
    %502 = vmatprep.subr.mxu0 0.0
    %503 = vmatpush1.msra.mxu0 0.0
    %504 = vmatprep.subr.mxu0 0.0
    %505 = vmatpush1.msra.mxu0 0.0
    %506 = vmatprep.subr.mxu0 0.0
    %507 = vmatpush1.msra.mxu0 0.0
    %508 = vmatprep.subr.mxu0 0.0
    %509 = vmatpush1.msra.mxu0 0.0
    %510 = vmatprep.subr.mxu0 0.0
    %511 = vmatpush1.msra.mxu0 0.0
    %512 = vmatprep.subr.mxu0 0.0
    %513 = vmatpush1.msra.mxu0 0.0
    %514 = vmatprep.subr.mxu0 0.0
    %515 = vmatpush1.msra.mxu0 0.0
    %516 = vmatprep.mubr.f32.mxu0 0.0
    %517 = vmatmul.mubr.f32.gmra.mrb[0].mxu0 %v450
    %v518 = vpop.f32.mrb[0].mxu0
    %v519 = vadd.f32 0.0, %v518
    %v520 = vpop.f32.mrb[0].mxu0
    %v521 = vadd.f32 0.0, %v520
    %522 = vdwg.mxu0
    %v523 = vadd.f32 %v445, %v519
    %v524 = vxor.u32 %v523, 2147483648
    %v525 = vmul.f32 %v524, 1.442695
    %v526 = vpow.pop %v525
    %v527 = vadd.f32 %v526, 1.0
    %v528 = vrcp.pop %v527
    %v529 = vmul.f32 1.0, %v528
    %v530 = vadd.f32 %v521, %v238
    %v531 = vmul.f32 %v529, %v530
    %v532 = vadd.f32 %v446, %v531
    %v533 = vtanh.pop %v532
    %v534 = vsub.f32 1.0, %v529
    %536 = vrot.lane.b32.xlu0 %v533, 64
    %v537 = vpop.permute.xlu0 %536
    %v539 = vmul.f32 %v534, %v537
    %v540 = vmul.f32 %v529, %v441
    %v541 = vadd.f32 %v539, %v540
    %s542 = smul.u32 3, 2
    %s543 = smul.addr %s542, 8
    %s544 = scalar_lea.vmem [#allocation2], %s543
    %v545 = vld [vmem:[%s544] sm:$0xff]
    %v546 = vld [vmem:[%s544 + $0x8] sm:$0xff]
    %548 = vrot.lane.b32.xlu0 %v541, 64
    %v549 = vpop.permute.xlu0 %548
    %v550 = vsel %vm201, %v549, 0
    %552 = vmatprep.subr.mxu0 %v218
    %553 = vmatpush1.msra.mxu0 %v217
    %554 = vmatprep.subr.mxu0 %v220
    %555 = vmatpush1.msra.mxu0 %v219
    %556 = vmatprep.subr.mxu0 %v222
    %557 = vmatpush1.msra.mxu0 %v221
    %558 = vmatprep.subr.mxu0 %v224
    %559 = vmatpush1.msra.mxu0 %v223
    %560 = vmatprep.subr.mxu0 %v226
    %561 = vmatpush1.msra.mxu0 %v225
    %562 = vmatprep.subr.mxu0 %v228
    %563 = vmatpush1.msra.mxu0 %v227
    %564 = vmatprep.subr.mxu0 %v230
    %565 = vmatpush1.msra.mxu0 %v229
    %566 = vmatprep.subr.mxu0 %v232
    %567 = vmatpush1.msra.mxu0 %v231
    %568 = vmatprep.subr.mxu0 0.0
    %569 = vmatpush1.msra.mxu0 0.0
    %570 = vmatprep.subr.mxu0 0.0
    %571 = vmatpush1.msra.mxu0 0.0
    %572 = vmatprep.subr.mxu0 0.0
    %573 = vmatpush1.msra.mxu0 0.0
    %574 = vmatprep.subr.mxu0 0.0
    %575 = vmatpush1.msra.mxu0 0.0
    %576 = vmatprep.subr.mxu0 0.0
    %577 = vmatpush1.msra.mxu0 0.0
    %578 = vmatprep.subr.mxu0 0.0
    %579 = vmatpush1.msra.mxu0 0.0
    %580 = vmatprep.subr.mxu0 0.0
    %581 = vmatpush1.msra.mxu0 0.0
    %582 = vmatprep.subr.mxu0 0.0
    %583 = vmatpush1.msra.mxu0 0.0
    %584 = vmatprep.subr.mxu0 0.0
    %585 = vmatpush1.msra.mxu0 0.0
    %586 = vmatprep.subr.mxu0 0.0
    %587 = vmatpush1.msra.mxu0 0.0
    %588 = vmatprep.subr.mxu0 0.0
    %589 = vmatpush1.msra.mxu0 0.0
    %590 = vmatprep.subr.mxu0 0.0
    %591 = vmatpush1.msra.mxu0 0.0
    %592 = vmatprep.subr.mxu0 0.0
    %593 = vmatpush1.msra.mxu0 0.0
    %594 = vmatprep.subr.mxu0 0.0
    %595 = vmatpush1.msra.mxu0 0.0
    %596 = vmatprep.subr.mxu0 0.0
    %597 = vmatpush1.msra.mxu0 0.0
    %598 = vmatprep.subr.mxu0 0.0
    %599 = vmatpush1.msra.mxu0 0.0
    %600 = vmatprep.subr.mxu0 0.0
    %601 = vmatpush1.msra.mxu0 0.0
    %602 = vmatprep.subr.mxu0 0.0
    %603 = vmatpush1.msra.mxu0 0.0
    %604 = vmatprep.subr.mxu0 0.0
    %605 = vmatpush1.msra.mxu0 0.0
    %606 = vmatprep.subr.mxu0 0.0
    %607 = vmatpush1.msra.mxu0 0.0
    %608 = vmatprep.subr.mxu0 0.0
    %609 = vmatpush1.msra.mxu0 0.0
    %610 = vmatprep.subr.mxu0 0.0
    %611 = vmatpush1.msra.mxu0 0.0
    %612 = vmatprep.subr.mxu0 0.0
    %613 = vmatpush1.msra.mxu0 0.0
    %614 = vmatprep.subr.mxu0 0.0
    %615 = vmatpush1.msra.mxu0 0.0
    %616 = vmatprep.mubr.f32.mxu0 0.0
    %617 = vmatmul.mubr.f32.gmra.mrb[0].mxu0 %v550
    %v618 = vpop.f32.mrb[0].mxu0
    %v619 = vadd.f32 0.0, %v618
    %v620 = vpop.f32.mrb[0].mxu0
    %v621 = vadd.f32 0.0, %v620
    %622 = vdwg.mxu0
    %v623 = vadd.f32 %v545, %v619
    %v624 = vxor.u32 %v623, 2147483648
    %v625 = vmul.f32 %v624, 1.442695
    %v626 = vpow.pop %v625
    %v627 = vadd.f32 %v626, 1.0
    %v628 = vrcp.pop %v627
    %v629 = vmul.f32 1.0, %v628
    %v630 = vadd.f32 %v621, %v238
    %v631 = vmul.f32 %v629, %v630
    %v632 = vadd.f32 %v546, %v631
    %v633 = vtanh.pop %v632
    %v634 = vsub.f32 1.0, %v629
    %636 = vrot.lane.b32.xlu0 %v633, 64
    %v637 = vpop.permute.xlu0 %636
    %v639 = vmul.f32 %v634, %v637
    %v640 = vmul.f32 %v629, %v541
    %v641 = vadd.f32 %v639, %v640
    %s642 = smul.u32 4, 2
    %s643 = smul.addr %s642, 8
    %s644 = scalar_lea.vmem [#allocation2], %s643
    %v645 = vld [vmem:[%s644] sm:$0xff]
    %v646 = vld [vmem:[%s644 + $0x8] sm:$0xff]
    %648 = vrot.lane.b32.xlu0 %v641, 64
    %v649 = vpop.permute.xlu0 %648
    %v650 = vsel %vm201, %v649, 0
    %652 = vmatprep.subr.mxu0 %v218
    %653 = vmatpush1.msra.mxu0 %v217
    %654 = vmatprep.subr.mxu0 %v220
    %655 = vmatpush1.msra.mxu0 %v219
    %656 = vmatprep.subr.mxu0 %v222
    %657 = vmatpush1.msra.mxu0 %v221
    %658 = vmatprep.subr.mxu0 %v224
    %659 = vmatpush1.msra.mxu0 %v223
    %660 = vmatprep.subr.mxu0 %v226
    %661 = vmatpush1.msra.mxu0 %v225
    %662 = vmatprep.subr.mxu0 %v228
    %663 = vmatpush1.msra.mxu0 %v227
    %664 = vmatprep.subr.mxu0 %v230
    %665 = vmatpush1.msra.mxu0 %v229
    %666 = vmatprep.subr.mxu0 %v232
    %667 = vmatpush1.msra.mxu0 %v231
    %668 = vmatprep.subr.mxu0 0.0
    %669 = vmatpush1.msra.mxu0 0.0
    %670 = vmatprep.subr.mxu0 0.0
    %671 = vmatpush1.msra.mxu0 0.0
    %672 = vmatprep.subr.mxu0 0.0
    %673 = vmatpush1.msra.mxu0 0.0
    %674 = vmatprep.subr.mxu0 0.0
    %675 = vmatpush1.msra.mxu0 0.0
    %676 = vmatprep.subr.mxu0 0.0
    %677 = vmatpush1.msra.mxu0 0.0
    %678 = vmatprep.subr.mxu0 0.0
    %679 = vmatpush1.msra.mxu0 0.0
    %680 = vmatprep.subr.mxu0 0.0
    %681 = vmatpush1.msra.mxu0 0.0
    %682 = vmatprep.subr.mxu0 0.0
    %683 = vmatpush1.msra.mxu0 0.0
    %684 = vmatprep.subr.mxu0 0.0
    %685 = vmatpush1.msra.mxu0 0.0
    %686 = vmatprep.subr.mxu0 0.0
    %687 = vmatpush1.msra.mxu0 0.0
    %688 = vmatprep.subr.mxu0 0.0
    %689 = vmatpush1.msra.mxu0 0.0
    %690 = vmatprep.subr.mxu0 0.0
    %691 = vmatpush1.msra.mxu0 0.0
    %692 = vmatprep.subr.mxu0 0.0
    %693 = vmatpush1.msra.mxu0 0.0
    %694 = vmatprep.subr.mxu0 0.0
    %695 = vmatpush1.msra.mxu0 0.0
    %696 = vmatprep.subr.mxu0 0.0
    %697 = vmatpush1.msra.mxu0 0.0
    %698 = vmatprep.subr.mxu0 0.0
    %699 = vmatpush1.msra.mxu0 0.0
    %700 = vmatprep.subr.mxu0 0.0
    %701 = vmatpush1.msra.mxu0 0.0
    %702 = vmatprep.subr.mxu0 0.0
    %703 = vmatpush1.msra.mxu0 0.0
    %704 = vmatprep.subr.mxu0 0.0
    %705 = vmatpush1.msra.mxu0 0.0
    %706 = vmatprep.subr.mxu0 0.0
    %707 = vmatpush1.msra.mxu0 0.0
    %708 = vmatprep.subr.mxu0 0.0
    %709 = vmatpush1.msra.mxu0 0.0
    %710 = vmatprep.subr.mxu0 0.0
    %711 = vmatpush1.msra.mxu0 0.0
    %712 = vmatprep.subr.mxu0 0.0
    %713 = vmatpush1.msra.mxu0 0.0
    %714 = vmatprep.subr.mxu0 0.0
    %715 = vmatpush1.msra.mxu0 0.0
    %716 = vmatprep.mubr.f32.mxu0 0.0
    %717 = vmatmul.mubr.f32.gmra.mrb[0].mxu0 %v650
    %v718 = vpop.f32.mrb[0].mxu0
    %v719 = vadd.f32 0.0, %v718
    %v720 = vpop.f32.mrb[0].mxu0
    %v721 = vadd.f32 0.0, %v720
    %722 = vdwg.mxu0
    %v723 = vadd.f32 %v645, %v719
    %v724 = vxor.u32 %v723, 2147483648
    %v725 = vmul.f32 %v724, 1.442695
    %v726 = vpow.pop %v725
    %v727 = vadd.f32 %v726, 1.0
    %v728 = vrcp.pop %v727
    %v729 = vmul.f32 1.0, %v728
    %v730 = vadd.f32 %v721, %v238
    %v731 = vmul.f32 %v729, %v730
    %v732 = vadd.f32 %v646, %v731
    %v733 = vtanh.pop %v732
    %v734 = vsub.f32 1.0, %v729
    %736 = vrot.lane.b32.xlu0 %v733, 64
    %v737 = vpop.permute.xlu0 %736
    %v739 = vmul.f32 %v734, %v737
    %v740 = vmul.f32 %v729, %v641
    %v741 = vadd.f32 %v739, %v740
    %s742 = smul.u32 5, 2
    %s743 = smul.addr %s742, 8
    %s744 = scalar_lea.vmem [#allocation2], %s743
    %v745 = vld [vmem:[%s744] sm:$0xff]
    %v746 = vld [vmem:[%s744 + $0x8] sm:$0xff]
    %748 = vrot.lane.b32.xlu0 %v741, 64
    %v749 = vpop.permute.xlu0 %748
    %v750 = vsel %vm201, %v749, 0
    %752 = vmatprep.subr.mxu0 %v218
    %753 = vmatpush1.msra.mxu0 %v217
    %754 = vmatprep.subr.mxu0 %v220
    %755 = vmatpush1.msra.mxu0 %v219
    %756 = vmatprep.subr.mxu0 %v222
    %757 = vmatpush1.msra.mxu0 %v221
    %758 = vmatprep.subr.mxu0 %v224
    %759 = vmatpush1.msra.mxu0 %v223
    %760 = vmatprep.subr.mxu0 %v226
    %761 = vmatpush1.msra.mxu0 %v225
    %762 = vmatprep.subr.mxu0 %v228
    %763 = vmatpush1.msra.mxu0 %v227
    %764 = vmatprep.subr.mxu0 %v230
    %765 = vmatpush1.msra.mxu0 %v229
    %766 = vmatprep.subr.mxu0 %v232
    %767 = vmatpush1.msra.mxu0 %v231
    %768 = vmatprep.subr.mxu0 0.0
    %769 = vmatpush1.msra.mxu0 0.0
    %770 = vmatprep.subr.mxu0 0.0
    %771 = vmatpush1.msra.mxu0 0.0
    %772 = vmatprep.subr.mxu0 0.0
    %773 = vmatpush1.msra.mxu0 0.0
    %774 = vmatprep.subr.mxu0 0.0
    %775 = vmatpush1.msra.mxu0 0.0
    %776 = vmatprep.subr.mxu0 0.0
    %777 = vmatpush1.msra.mxu0 0.0
    %778 = vmatprep.subr.mxu0 0.0
    %779 = vmatpush1.msra.mxu0 0.0
    %780 = vmatprep.subr.mxu0 0.0
    %781 = vmatpush1.msra.mxu0 0.0
    %782 = vmatprep.subr.mxu0 0.0
    %783 = vmatpush1.msra.mxu0 0.0
    %784 = vmatprep.subr.mxu0 0.0
    %785 = vmatpush1.msra.mxu0 0.0
    %786 = vmatprep.subr.mxu0 0.0
    %787 = vmatpush1.msra.mxu0 0.0
    %788 = vmatprep.subr.mxu0 0.0
    %789 = vmatpush1.msra.mxu0 0.0
    %790 = vmatprep.subr.mxu0 0.0
    %791 = vmatpush1.msra.mxu0 0.0
    %792 = vmatprep.subr.mxu0 0.0
    %793 = vmatpush1.msra.mxu0 0.0
    %794 = vmatprep.subr.mxu0 0.0
    %795 = vmatpush1.msra.mxu0 0.0
    %796 = vmatprep.subr.mxu0 0.0
    %797 = vmatpush1.msra.mxu0 0.0
    %798 = vmatprep.subr.mxu0 0.0
    %799 = vmatpush1.msra.mxu0 0.0
    %800 = vmatprep.subr.mxu0 0.0
    %801 = vmatpush1.msra.mxu0 0.0
    %802 = vmatprep.subr.mxu0 0.0
    %803 = vmatpush1.msra.mxu0 0.0
    %804 = vmatprep.subr.mxu0 0.0
    %805 = vmatpush1.msra.mxu0 0.0
    %806 = vmatprep.subr.mxu0 0.0
    %807 = vmatpush1.msra.mxu0 0.0
    %808 = vmatprep.subr.mxu0 0.0
    %809 = vmatpush1.msra.mxu0 0.0
    %810 = vmatprep.subr.mxu0 0.0
    %811 = vmatpush1.msra.mxu0 0.0
    %812 = vmatprep.subr.mxu0 0.0
    %813 = vmatpush1.msra.mxu0 0.0
    %814 = vmatprep.subr.mxu0 0.0
    %815 = vmatpush1.msra.mxu0 0.0
    %816 = vmatprep.mubr.f32.mxu0 0.0
    %817 = vmatmul.mubr.f32.gmra.mrb[0].mxu0 %v750
    %v818 = vpop.f32.mrb[0].mxu0
    %v819 = vadd.f32 0.0, %v818
    %v820 = vpop.f32.mrb[0].mxu0
    %v821 = vadd.f32 0.0, %v820
    %822 = vdwg.mxu0
    %v823 = vadd.f32 %v745, %v819
    %v824 = vxor.u32 %v823, 2147483648
    %v825 = vmul.f32 %v824, 1.442695
    %v826 = vpow.pop %v825
    %v827 = vadd.f32 %v826, 1.0
    %v828 = vrcp.pop %v827
    %v829 = vmul.f32 1.0, %v828
    %v830 = vadd.f32 %v821, %v238
    %v831 = vmul.f32 %v829, %v830
    %v832 = vadd.f32 %v746, %v831
    %v833 = vtanh.pop %v832
    %v834 = vsub.f32 1.0, %v829
    %836 = vrot.lane.b32.xlu0 %v833, 64
    %v837 = vpop.permute.xlu0 %836
    %v839 = vmul.f32 %v834, %v837
    %v840 = vmul.f32 %v829, %v741
    %v841 = vadd.f32 %v839, %v840
    %s842 = smul.u32 6, 2
    %s843 = smul.addr %s842, 8
    %s844 = scalar_lea.vmem [#allocation2], %s843
    %v845 = vld [vmem:[%s844] sm:$0xff]
    %v846 = vld [vmem:[%s844 + $0x8] sm:$0xff]
    %848 = vrot.lane.b32.xlu0 %v841, 64
    %v849 = vpop.permute.xlu0 %848
    %v850 = vsel %vm201, %v849, 0
    %852 = vmatprep.subr.mxu0 %v218
    %853 = vmatpush1.msra.mxu0 %v217
    %854 = vmatprep.subr.mxu0 %v220
    %855 = vmatpush1.msra.mxu0 %v219
    %856 = vmatprep.subr.mxu0 %v222
    %857 = vmatpush1.msra.mxu0 %v221
    %858 = vmatprep.subr.mxu0 %v224
    %859 = vmatpush1.msra.mxu0 %v223
    %860 = vmatprep.subr.mxu0 %v226
    %861 = vmatpush1.msra.mxu0 %v225
    %862 = vmatprep.subr.mxu0 %v228
    %863 = vmatpush1.msra.mxu0 %v227
    %864 = vmatprep.subr.mxu0 %v230
    %865 = vmatpush1.msra.mxu0 %v229
    %866 = vmatprep.subr.mxu0 %v232
    %867 = vmatpush1.msra.mxu0 %v231
    %868 = vmatprep.subr.mxu0 0.0
    %869 = vmatpush1.msra.mxu0 0.0
    %870 = vmatprep.subr.mxu0 0.0
    %871 = vmatpush1.msra.mxu0 0.0
    %872 = vmatprep.subr.mxu0 0.0
    %873 = vmatpush1.msra.mxu0 0.0
    %874 = vmatprep.subr.mxu0 0.0
    %875 = vmatpush1.msra.mxu0 0.0
    %876 = vmatprep.subr.mxu0 0.0
    %877 = vmatpush1.msra.mxu0 0.0
    %878 = vmatprep.subr.mxu0 0.0
    %879 = vmatpush1.msra.mxu0 0.0
    %880 = vmatprep.subr.mxu0 0.0
    %881 = vmatpush1.msra.mxu0 0.0
    %882 = vmatprep.subr.mxu0 0.0
    %883 = vmatpush1.msra.mxu0 0.0
    %884 = vmatprep.subr.mxu0 0.0
    %885 = vmatpush1.msra.mxu0 0.0
    %886 = vmatprep.subr.mxu0 0.0
    %887 = vmatpush1.msra.mxu0 0.0
    %888 = vmatprep.subr.mxu0 0.0
    %889 = vmatpush1.msra.mxu0 0.0
    %890 = vmatprep.subr.mxu0 0.0
    %891 = vmatpush1.msra.mxu0 0.0
    %892 = vmatprep.subr.mxu0 0.0
    %893 = vmatpush1.msra.mxu0 0.0
    %894 = vmatprep.subr.mxu0 0.0
    %895 = vmatpush1.msra.mxu0 0.0
    %896 = vmatprep.subr.mxu0 0.0
    %897 = vmatpush1.msra.mxu0 0.0
    %898 = vmatprep.subr.mxu0 0.0
    %899 = vmatpush1.msra.mxu0 0.0
    %900 = vmatprep.subr.mxu0 0.0
    %901 = vmatpush1.msra.mxu0 0.0
    %902 = vmatprep.subr.mxu0 0.0
    %903 = vmatpush1.msra.mxu0 0.0
    %904 = vmatprep.subr.mxu0 0.0
    %905 = vmatpush1.msra.mxu0 0.0
    %906 = vmatprep.subr.mxu0 0.0
    %907 = vmatpush1.msra.mxu0 0.0
    %908 = vmatprep.subr.mxu0 0.0
    %909 = vmatpush1.msra.mxu0 0.0
    %910 = vmatprep.subr.mxu0 0.0
    %911 = vmatpush1.msra.mxu0 0.0
    %912 = vmatprep.subr.mxu0 0.0
    %913 = vmatpush1.msra.mxu0 0.0
    %914 = vmatprep.subr.mxu0 0.0
    %915 = vmatpush1.msra.mxu0 0.0
    %916 = vmatprep.mubr.f32.mxu0 0.0
    %917 = vmatmul.mubr.f32.gmra.mrb[0].mxu0 %v850
    %v918 = vpop.f32.mrb[0].mxu0
    %v919 = vadd.f32 0.0, %v918
    %v920 = vpop.f32.mrb[0].mxu0
    %v921 = vadd.f32 0.0, %v920
    %922 = vdwg.mxu0
    %v923 = vadd.f32 %v845, %v919
    %v924 = vxor.u32 %v923, 2147483648
    %v925 = vmul.f32 %v924, 1.442695
    %v926 = vpow.pop %v925
    %v927 = vadd.f32 %v926, 1.0
    %v928 = vrcp.pop %v927
    %v929 = vmul.f32 1.0, %v928
    %v930 = vadd.f32 %v921, %v238
    %v931 = vmul.f32 %v929, %v930
    %v932 = vadd.f32 %v846, %v931
    %v933 = vtanh.pop %v932
    %v934 = vsub.f32 1.0, %v929
    %936 = vrot.lane.b32.xlu0 %v933, 64
    %v937 = vpop.permute.xlu0 %936
    %v939 = vmul.f32 %v934, %v937
    %v940 = vmul.f32 %v929, %v841
    %v941 = vadd.f32 %v939, %v940
    %s942 = smul.u32 7, 2
    %s943 = smul.addr %s942, 8
    %s944 = scalar_lea.vmem [#allocation2], %s943
    %v945 = vld [vmem:[%s944] sm:$0xff]
    %v946 = vld [vmem:[%s944 + $0x8] sm:$0xff]
    %948 = vrot.lane.b32.xlu0 %v941, 64
    %v949 = vpop.permute.xlu0 %948
    %v950 = vsel %vm201, %v949, 0
    %952 = vmatprep.subr.mxu0 %v218
    %953 = vmatpush1.msra.mxu0 %v217
    %954 = vmatprep.subr.mxu0 %v220
    %955 = vmatpush1.msra.mxu0 %v219
    %956 = vmatprep.subr.mxu0 %v222
    %957 = vmatpush1.msra.mxu0 %v221
    %958 = vmatprep.subr.mxu0 %v224
    %959 = vmatpush1.msra.mxu0 %v223
    %960 = vmatprep.subr.mxu0 %v226
    %961 = vmatpush1.msra.mxu0 %v225
    %962 = vmatprep.subr.mxu0 %v228
    %963 = vmatpush1.msra.mxu0 %v227
    %964 = vmatprep.subr.mxu0 %v230
    %965 = vmatpush1.msra.mxu0 %v229
    %966 = vmatprep.subr.mxu0 %v232
    %967 = vmatpush1.msra.mxu0 %v231
    %968 = vmatprep.subr.mxu0 0.0
    %969 = vmatpush1.msra.mxu0 0.0
    %970 = vmatprep.subr.mxu0 0.0
    %971 = vmatpush1.msra.mxu0 0.0
    %972 = vmatprep.subr.mxu0 0.0
    %973 = vmatpush1.msra.mxu0 0.0
    %974 = vmatprep.subr.mxu0 0.0
    %975 = vmatpush1.msra.mxu0 0.0
    %976 = vmatprep.subr.mxu0 0.0
    %977 = vmatpush1.msra.mxu0 0.0
    %978 = vmatprep.subr.mxu0 0.0
    %979 = vmatpush1.msra.mxu0 0.0
    %980 = vmatprep.subr.mxu0 0.0
    %981 = vmatpush1.msra.mxu0 0.0
    %982 = vmatprep.subr.mxu0 0.0
    %983 = vmatpush1.msra.mxu0 0.0
    %984 = vmatprep.subr.mxu0 0.0
    %985 = vmatpush1.msra.mxu0 0.0
    %986 = vmatprep.subr.mxu0 0.0
    %987 = vmatpush1.msra.mxu0 0.0
    %988 = vmatprep.subr.mxu0 0.0
    %989 = vmatpush1.msra.mxu0 0.0
    %990 = vmatprep.subr.mxu0 0.0
    %991 = vmatpush1.msra.mxu0 0.0
    %992 = vmatprep.subr.mxu0 0.0
    %993 = vmatpush1.msra.mxu0 0.0
    %994 = vmatprep.subr.mxu0 0.0
    %995 = vmatpush1.msra.mxu0 0.0
    %996 = vmatprep.subr.mxu0 0.0
    %997 = vmatpush1.msra.mxu0 0.0
    %998 = vmatprep.subr.mxu0 0.0
    %999 = vmatpush1.msra.mxu0 0.0
    %1000 = vmatprep.subr.mxu0 0.0
    %1001 = vmatpush1.msra.mxu0 0.0
    %1002 = vmatprep.subr.mxu0 0.0
    %1003 = vmatpush1.msra.mxu0 0.0
    %1004 = vmatprep.subr.mxu0 0.0
    %1005 = vmatpush1.msra.mxu0 0.0
    %1006 = vmatprep.subr.mxu0 0.0
    %1007 = vmatpush1.msra.mxu0 0.0
    %1008 = vmatprep.subr.mxu0 0.0
    %1009 = vmatpush1.msra.mxu0 0.0
    %1010 = vmatprep.subr.mxu0 0.0
    %1011 = vmatpush1.msra.mxu0 0.0
    %1012 = vmatprep.subr.mxu0 0.0
    %1013 = vmatpush1.msra.mxu0 0.0
    %1014 = vmatprep.subr.mxu0 0.0
    %1015 = vmatpush1.msra.mxu0 0.0
    %1016 = vmatprep.mubr.f32.mxu0 0.0
    %1017 = vmatmul.mubr.f32.gmra.mrb[0].mxu0 %v950
    %v1018 = vpop.f32.mrb[0].mxu0
    %v1019 = vadd.f32 0.0, %v1018
    %v1020 = vpop.f32.mrb[0].mxu0
    %v1021 = vadd.f32 0.0, %v1020
    %1022 = vdwg.mxu0
    %v1023 = vadd.f32 %v945, %v1019
    %v1024 = vxor.u32 %v1023, 2147483648
    %v1025 = vmul.f32 %v1024, 1.442695
    %v1026 = vpow.pop %v1025
    %v1027 = vadd.f32 %v1026, 1.0
    %v1028 = vrcp.pop %v1027
    %v1029 = vmul.f32 1.0, %v1028
    %v1030 = vadd.f32 %v1021, %v238
    %v1031 = vmul.f32 %v1029, %v1030
    %v1032 = vadd.f32 %v946, %v1031
    %v1033 = vtanh.pop %v1032
    %v1034 = vsub.f32 1.0, %v1029
    %1036 = vrot.lane.b32.xlu0 %v1033, 64
    %v1037 = vpop.permute.xlu0 %1036
    %v1039 = vmul.f32 %v1034, %v1037
    %v1040 = vmul.f32 %v1029, %v941
    %v1041 = vadd.f32 %v1039, %v1040
    %1043 = vrot.lane.b32.xlu0 %v1041, 64
    %v1044 = vpop.permute.xlu0 %1043
    %1046 = vst.msk [vmem:[#allocation6] sm:$0xff] %vm201, %v1044
    // Predicated region
    $region30: #{tpu_custom_call.1} parent=1 // pred_check
      _
    $region31: #{tpu_custom_call.1} parent=1 // pred_check_branch
      %1048 = sbr.rel (0) target = $region33
    $region32: #{tpu_custom_call.1} parent=1 // pred_region
      %s1050 = ssub.s32 128, 128
      %1051 = vsyncadd [#allocation5], %s1050
      %s1053 = sshll.u32 [#allocation6], 4
      %s1054 = int_to_ptr.vmem [resolvable:$true] %s1053
      %1056 = dma.vmem_to_hbm [thread:$0]  %s1054, 128, %s6, [#allocation5]
    $region33: #{tpu_custom_call.1} parent=1 // pred_fallthru
      _
    // Predicated region
    $region34: #{tpu_custom_call.1} parent=1 // pred_check
      _
    $region35: #{tpu_custom_call.1} parent=1 // pred_check_branch
      %1058 = sbr.rel (0) target = $region37
    $region36: #{tpu_custom_call.1} parent=1 // pred_region
      %1059 = dma.done [#allocation5], 128
    $region37: #{tpu_custom_call.1} parent=1 // pred_fallthru
      _
    %1060 = vsyncpa [#allocation4], 1
    %1061 = vsyncpa [#allocation5], 1

</llo_original>
